<compile_context>
chip_gen: v5e
topology: v5e:2x2
jax: 0.10.0
libtpu: 0.0.40
codegen_flags: <defaults>
</compile_context>

<pallas_src>
import functools

import jax
import jax.numpy as jnp
from jax import lax
from jax.experimental import pallas as pl
from jax.experimental.pallas import tpu as pltpu


def _round_up(v, m):
    return (v + m - 1) // m * m


def _cdiv(a, b):
    return -(-a // b)


def _vmem_capacity_bytes():
    try:
        return int(pltpu.get_tpu_info().vmem_capacity_bytes)
    except Exception:
        return 64 << 20  # conservative: v7x per-TC VMEM


# ----------------------------------------------------------------------------
# Kernels
# ----------------------------------------------------------------------------

def _nl_kernel_single(rinv_ref, cinv_ref, x_ref, w_ref, o_ref, *, precision):
    # Whole reduction dim resident: one MXU matmul + rank-1 rescale.
    acc = jnp.dot(x_ref[...], w_ref[...],
                  preferred_element_type=jnp.float32, precision=precision)
    o_ref[...] = (acc * rinv_ref[...] * cinv_ref[...]).astype(o_ref.dtype)


def _nl_kernel_ktiled(rinv_ref, cinv_ref, x_ref, w_ref, o_ref, acc_ref, *,
                      precision):
    k = pl.program_id(2)

    @pl.when(k == 0)
    def _():
        acc_ref[...] = jnp.zeros_like(acc_ref)

    acc_ref[...] += jnp.dot(x_ref[...], w_ref[...],
                            preferred_element_type=jnp.float32,
                            precision=precision)

    @pl.when(k == pl.num_programs(2) - 1)
    def _():
        o_ref[...] = (acc_ref[...] * rinv_ref[...] * cinv_ref[...]
                      ).astype(o_ref.dtype)


# ----------------------------------------------------------------------------
# Wrapper
# ----------------------------------------------------------------------------

def normed_linear(x, weight, *, tm=None, tn=None, tk=None,
                  mxu_dtype=jnp.bfloat16, out_dtype=jnp.float32):
    """x: (N, C), weight: (C, O) -> (N, O) out_dtype.

    Equivalent to F.normalize(x, dim=1) @ F.normalize(weight, dim=0).
    mxu_dtype=bf16 is the production path; mxu_dtype=float32 is an
    exact-precision (HIGHEST) test-only path (3-6x more MXU passes).
    """
    N, C = x.shape
    Cw, O = weight.shape
    assert C == Cw, "in_features mismatch"

    # -- Hoisted norm pre-pass: tiny f32 reductions, computed once (not per
    #    grid step) from the *original* arrays.  1/max(||.||, eps) with
    #    eps=1e-12 (F.normalize default) == min(rsqrt(sum_sq), 1e12).
    xf = x.astype(jnp.float32)
    wf = weight.astype(jnp.float32)
    inv_eps = jnp.float32(1e12)
    row_inv = jnp.minimum(
        lax.rsqrt(jnp.sum(xf * xf, axis=1, keepdims=True)), inv_eps)   # (N, 1)
    col_inv = jnp.minimum(
        lax.rsqrt(jnp.sum(wf * wf, axis=0, keepdims=True)), inv_eps)   # (1, O)

    # -- Pre-cast MXU operands once (halves HBM bytes on the bf16 path and
    #    removes in-kernel full-tile cast passes).
    exact = jnp.dtype(mxu_dtype) == jnp.dtype(jnp.float32)
    precision = lax.Precision.HIGHEST if exact else None
    x_op = x.astype(mxu_dtype)
    w_op = weight.astype(mxu_dtype)
    op_bytes = jnp.dtype(mxu_dtype).itemsize
    out_bytes = jnp.dtype(out_dtype).itemsize
    row_align = 8 if op_bytes >= 4 else 16   # sublane packing for narrow dtypes

    vmem_cap = _vmem_capacity_bytes()
    vmem_budget = vmem_cap // 2              # tile-selection budget (headroom)
    vmem_limit = (vmem_cap * 7) // 8

    # -- Tile selection.
    Cp = _round_up(C, 128)                   # lane-align K; zero pad is neutral.

    if tm is None:
        # Small batch (classifier case): keep all of x resident so it is DMA'd
        # once and each weight tile is streamed exactly once.
        tm = _round_up(N, row_align) if N <= 512 else 256
    tm = min(_round_up(tm, row_align), _round_up(N, row_align))

    if tn is None:
        tn = 512                             # wide lane-dense tiles; fewer x refetches
    tn = min(_round_up(tn, 128), _round_up(O, 128))

    def _footprint(tk_):
        # double-buffered operand tiles + double-buffered out tile + norm tiles
        f = 2 * (tm * tk_ + tk_ * tn) * op_bytes
        f += 2 * tm * tn * out_bytes
        f += 2 * (tm + tn) * 4
        return f

    if tk is None:
        tk = Cp
        if _footprint(tk) > vmem_budget:
            # K-tile: shrink tk (multiple of 128) until the footprint plus the
            # f32 accumulator scratch fits the budget.
            nk_try = 2
            while True:
                tk = _round_up(_cdiv(Cp, nk_try), 128)
                if _footprint(tk) + tm * tn * 4 <= vmem_budget or tk == 128:
                    break
                nk_try += 1
    tk = min(_round_up(tk, 128), Cp)
    Cp = _round_up(Cp, tk)
    nk = Cp // tk

    Np = _round_up(N, tm)
    Op = _round_up(O, tn)

    # -- Pad only the dims that need it.  Norms were computed pre-padding, so
    #    zero-padding K / rows / cols is dot- and norm-neutral; padded output
    #    rows/cols are sliced off below.
    if (Np, Cp) != (N, C):
        x_op = jnp.pad(x_op, ((0, Np - N), (0, Cp - C)))
    if (Cp, Op) != (C, O):
        w_op = jnp.pad(w_op, ((0, Cp - C), (0, Op - O)))
    if Np != N:
        row_inv = jnp.pad(row_inv, ((0, Np - N), (0, 0)))
    if Op != O:
        col_inv = jnp.pad(col_inv, ((0, 0), (0, Op - O)))

    # Grid: j (output-column tiles) outer so the weight tile's block index is
    # invariant along the inner i axis (single-K case: each W tile fetched
    # once per j).  K axis innermost, "arbitrary".  With the x-resident layout
    # (Np == tm) the only shardable parallel axis is j, which is exactly the
    # right megacore split on v7x (each core streams a disjoint half of W).
    grid = (Op // tn, Np // tm, nk)

    in_specs = [
        pl.BlockSpec((tm, 1), lambda j, i, k: (i, 0)),    # row_inv
        pl.BlockSpec((1, tn), lambda j, i, k: (0, j)),    # col_inv
        pl.BlockSpec((tm, tk), lambda j, i, k: (i, k)),   # x
        pl.BlockSpec((tk, tn), lambda j, i, k: (k, j)),   # w
    ]
    out_spec = pl.BlockSpec((tm, tn), lambda j, i, k: (i, j))

    if nk == 1:
        kernel = functools.partial(_nl_kernel_single, precision=precision)
        scratch_shapes = []
    else:
        kernel = functools.partial(_nl_kernel_ktiled, precision=precision)
        scratch_shapes = [pltpu.VMEM((tm, tn), jnp.float32)]

    out = pl.pallas_call(
        kernel,
        out_shape=jax.ShapeDtypeStruct((Np, Op), out_dtype),
        grid_spec=pltpu.PrefetchScalarGridSpec(
            num_scalar_prefetch=0,
            grid=grid,
            in_specs=in_specs,
            out_specs=out_spec,
            scratch_shapes=scratch_shapes,
        ),
        compiler_params=pltpu.CompilerParams(
            dimension_semantics=("parallel", "parallel", "arbitrary"),
            vmem_limit_bytes=vmem_limit,
        ),
        cost_estimate=pl.CostEstimate(
            flops=2 * Np * Cp * Op + 3 * Np * Op,
            transcendentals=0,
            bytes_accessed=(Np * Cp * op_bytes * (Op // tn)
                            + Cp * Op * op_bytes * (Np // tm if nk > 1 else 1)
                            + Np * Op * out_bytes),
        ),
    )(row_inv, col_inv, x_op, w_op)

    if Np != N or Op != O:
        out = out[:N, :O]
    return out


def init_normed_linear_weight(key, in_features, out_features):
    """Deterministic replica of:
       weight.uniform_(-1, 1).renorm_(2, 1, 1e-5).mul_(1e5)
    renorm_(p=2, dim=1, maxnorm=1e-5): each column whose L2 norm exceeds
    maxnorm is scaled by maxnorm / (norm + 1e-7).
    """
    w = jax.random.uniform(
        key, (in_features, out_features), dtype=jnp.float32,
        minval=-1.0, maxval=1.0)
    maxnorm = 1e-5
    col_norm = jnp.sqrt(jnp.sum(w * w, axis=0, keepdims=True))
    scale = jnp.where(col_norm > maxnorm, maxnorm / (col_norm + 1e-7), 1.0)
    return w * scale * 1e5


if __name__ == "__main__":
    key = jax.random.PRNGKey(0)
    k_x1, k_w1, k_x2, k_w2, k_x3, k_w3 = jax.random.split(key, 6)

    def ref(x, w):
        xh = x / jnp.maximum(
            jnp.sqrt(jnp.sum(x * x, axis=1, keepdims=True)), 1e-12)
        wh = w / jnp.maximum(
            jnp.sqrt(jnp.sum(w * w, axis=0, keepdims=True)), 1e-12)
        return jnp.dot(xh, wh, precision=lax.Precision.HIGHEST)

    # --- Test 1: tiny shape, exact f32 MXU path (tight semantic check) ---
    N1, C1, O1 = 8, 32, 16
    x1 = jax.random.normal(k_x1, (N1, C1), dtype=jnp.float32)
    w1 = init_normed_linear_weight(k_w1, C1, O1)
    out1 = jax.block_until_ready(normed_linear(x1, w1, mxu_dtype=jnp.float32))
    assert out1.shape == (N1, O1)
    assert jnp.allclose(out1, ref(x1, w1), atol=1e-4, rtol=1e-4)

    # --- Test 2: padding in every dim, default bf16 MXU, x-resident layout ---
    N2, C2, O2 = 48, 96, 200
    x2 = jax.random.normal(k_x2, (N2, C2), dtype=jnp.float32)
    w2 = init_normed_linear_weight(k_w2, C2, O2)
    out2 = jax.block_until_ready(normed_linear(x2, w2))
    assert out2.shape == (N2, O2)
    assert jnp.allclose(out2, ref(x2, w2), atol=1e-2, rtol=1e-2)

    # --- Test 3: forced K-tiled path (grid k-axis + f32 accumulator) ---
    N3, C3, O3 = 32, 512, 256
    x3 = jax.random.normal(k_x3, (N3, C3), dtype=jnp.float32)
    w3 = init_normed_linear_weight(k_w3, C3, O3)
    out3 = jax.block_until_ready(
        normed_linear(x3, w3, tk=128, mxu_dtype=jnp.float32))
    assert out3.shape == (N3, O3)
    assert jnp.allclose(out3, ref(x3, w3), atol=1e-3, rtol=1e-3)

    print("KERNEL_OK")
</pallas_src>

<mosaic_0001>
module attributes {stable_mosaic.version = 11 : i64} {
  func.func @_nl_kernel_single(%arg0: i32, %arg1: i32, %arg2: i32, %arg3: memref<8x1xf32, #tpu.memory_space<vmem>>, %arg4: memref<1x128xf32, #tpu.memory_space<vmem>>, %arg5: memref<8x128xf32, #tpu.memory_space<vmem>>, %arg6: memref<128x128xf32, #tpu.memory_space<vmem>>, %arg7: memref<8x128xf32, #tpu.memory_space<vmem>>) attributes {dimension_semantics = [#tpu.dimension_semantics<parallel>, #tpu.dimension_semantics<parallel>, #tpu.dimension_semantics<arbitrary>], iteration_bounds = array<i64: 1, 1, 1>, scalar_prefetch = 0 : i64, scratch_operands = 0 : i64, tpu.core_type = #tpu.core_type<tc>, window_params = [{transform_indices = @transform_0, window_bounds = array<i64: 8, 1>}, {transform_indices = @transform_1, window_bounds = array<i64: 1, 128>}, {transform_indices = @transform_2, window_bounds = array<i64: 8, 128>}, {transform_indices = @transform_3, window_bounds = array<i64: 128, 128>}, {transform_indices = @transform_4, window_bounds = array<i64: 8, 128>}]} {
    %c0 = arith.constant 0 : index
    %c0_0 = arith.constant 0 : index
    %0 = vector.load %arg5[%c0, %c0_0] : memref<8x128xf32, #tpu.memory_space<vmem>>, vector<8x128xf32>
    %c0_1 = arith.constant 0 : index
    %c0_2 = arith.constant 0 : index
    %1 = vector.load %arg6[%c0_1, %c0_2] : memref<128x128xf32, #tpu.memory_space<vmem>>, vector<128x128xf32>
    %cst = arith.constant dense<0.000000e+00> : vector<8x128xf32>
    %2 = tpu.matmul %0, %1, %cst {dimension_numbers = #tpu.dot_dimension_numbers<[1], [0], [0], [1], [0, 0, 1, 1], [], []>, precision = #tpu.contract_precision<fp32>} : vector<8x128xf32>, vector<128x128xf32>, vector<8x128xf32> -> vector<8x128xf32>
    %c0_3 = arith.constant 0 : index
    %c0_4 = arith.constant 0 : index
    %3 = vector.load %arg3[%c0_3, %c0_4] : memref<8x1xf32, #tpu.memory_space<vmem>>, vector<8x1xf32>
    %4 = vector.broadcast %3 : vector<8x1xf32> to vector<8x128xf32>
    %5 = arith.mulf %2, %4 : vector<8x128xf32>
    %c0_5 = arith.constant 0 : index
    %c0_6 = arith.constant 0 : index
    %6 = vector.load %arg4[%c0_5, %c0_6] : memref<1x128xf32, #tpu.memory_space<vmem>>, vector<1x128xf32>
    %7 = vector.broadcast %6 : vector<1x128xf32> to vector<8x128xf32>
    %8 = arith.mulf %5, %7 : vector<8x128xf32>
    %c0_7 = arith.constant 0 : index
    %c0_8 = arith.constant 0 : index
    %9 = vector.load %arg7[%c0_7, %c0_8] : memref<8x128xf32, #tpu.memory_space<vmem>>, vector<8x128xf32>
    tpu.vector_store %arg7[%c0_7, %c0_8], %8 {strides = array<i32>} : memref<8x128xf32, #tpu.memory_space<vmem>>, vector<8x128xf32>,
    return
  }
  func.func @transform_0(%arg0: i32, %arg1: i32, %arg2: i32) -> (i32, i32) {
    %c0_i32 = arith.constant 0 : i32
    %c0_i32_0 = arith.constant 0 : i32
    return %arg1, %c0_i32 : i32, i32
  }
  func.func @transform_1(%arg0: i32, %arg1: i32, %arg2: i32) -> (i32, i32) {
    %c0_i32 = arith.constant 0 : i32
    %c0_i32_0 = arith.constant 0 : i32
    return %c0_i32, %arg0 : i32, i32
  }
  func.func @transform_2(%arg0: i32, %arg1: i32, %arg2: i32) -> (i32, i32) {
    %c0_i32 = arith.constant 0 : i32
    return %arg1, %arg2 : i32, i32
  }
  func.func @transform_3(%arg0: i32, %arg1: i32, %arg2: i32) -> (i32, i32) {
    %c0_i32 = arith.constant 0 : i32
    return %arg2, %arg0 : i32, i32
  }
  func.func @transform_4(%arg0: i32, %arg1: i32, %arg2: i32) -> (i32, i32) {
    %c0_i32 = arith.constant 0 : i32
    return %arg1, %arg0 : i32, i32
  }
}

</mosaic_0001>

<llo_original>
// kernel: tpu_custom_call.1
$region0: #{tpu_custom_call.1}
  #allocation0 [shape = 'u32[]', space=smem, size = 0x4, offset = 0x4, fixed_abs, tag = 'smem constant byte address 0x4 - core index']
  #allocation1 [shape = 'u32[72,128]{1,0:T(1,128)}', space=vmem, size = 0x9000, scoped, tag = 'internal scratch']
  %s0 = inlined_call_operand.vmem [shape: f32[8,1], index: 0, kind: input, shape index: {}]
  %s1 = inlined_call_operand.vmem [shape: f32[1,128], index: 1, kind: input, shape index: {}]
  %s2 = inlined_call_operand.vmem [shape: f32[8,128], index: 2, kind: input, shape index: {}]
  %s3 = inlined_call_operand.hbm [shape: f32[128,128], index: 3, kind: input, shape index: {}]
  %s4 = inlined_call_operand.hbm [shape: f32[8,128], index: 4, kind: output, shape index: {}]
  %s5 = sld [smem:[#allocation0]]
  $region30: #{tpu_custom_call.1} parent=0
    _
  %s7 = ssub.s32 1, %s5
  %s8 = scalar_select 0, %s7, %s5
  $region1: #{tpu_custom_call.1} parent=0
    #allocation2 [shape = 'u8[65536]{0}', space=vmem, size = 0x10000, scoped, tag = 'input window, operand 3, single buffered']
    #allocation3 [shape = 's32[1]{0}', space=sflag, size = 0x4, scoped, tag = 'scoped memory for tpu_custom_call.1']
    #allocation4 [shape = 's32[1]{0}', space=sflag, size = 0x4, scoped, tag = 'scoped memory for tpu_custom_call.1']
    #allocation5 [shape = 'u8[4096]{0}', space=vmem, size = 0x1000, scoped, tag = 'output window, operand 0, single buffered']
    %9 = vsyncpa [#allocation3], 0
    %10 = vsyncpa [#allocation4], 0
    // Predicated region
    $region2: #{tpu_custom_call.1} parent=1 // pred_check
      _
    $region3: #{tpu_custom_call.1} parent=1 // pred_check_branch
      %12 = sbr.rel (0) target = $region5
    $region4: #{tpu_custom_call.1} parent=1 // pred_region
      _
    $region5: #{tpu_custom_call.1} parent=1 // pred_fallthru
      _
    // Predicated region
    $region6: #{tpu_custom_call.1} parent=1 // pred_check
      _
    $region7: #{tpu_custom_call.1} parent=1 // pred_check_branch
      %14 = sbr.rel (0) target = $region9
    $region8: #{tpu_custom_call.1} parent=1 // pred_region
      _
    $region9: #{tpu_custom_call.1} parent=1 // pred_fallthru
      _
    // Predicated region
    $region10: #{tpu_custom_call.1} parent=1 // pred_check
      _
    $region11: #{tpu_custom_call.1} parent=1 // pred_check_branch
      %16 = sbr.rel (0) target = $region13
    $region12: #{tpu_custom_call.1} parent=1 // pred_region
      _
    $region13: #{tpu_custom_call.1} parent=1 // pred_fallthru
      _
    // Predicated region
    $region14: #{tpu_custom_call.1} parent=1 // pred_check
      _
    $region15: #{tpu_custom_call.1} parent=1 // pred_check_branch
      %18 = sbr.rel (0) target = $region17
    $region16: #{tpu_custom_call.1} parent=1 // pred_region
      %20 = vsyncadd [#allocation3], 0
      %s21 = sshll.u32 %s3, 4
      %s22 = int_to_ptr.hbm [resolvable:$true] %s21
      %s23 = sshll.u32 [#allocation2], 4
      %s24 = int_to_ptr.vmem [resolvable:$true] %s23
      %29 = dma.hbm_to_vmem [thread:$0]  %s22, 2048, %s24, [#allocation3], 128, 128, 8
    $region17: #{tpu_custom_call.1} parent=1 // pred_fallthru
      _
    // Predicated region
    $region18: #{tpu_custom_call.1} parent=1 // pred_check
      _
    $region19: #{tpu_custom_call.1} parent=1 // pred_check_branch
      %31 = sbr.rel (0) target = $region21
    $region20: #{tpu_custom_call.1} parent=1 // pred_region
      %33 = dma.done [#allocation3], 2048
    $region21: #{tpu_custom_call.1} parent=1 // pred_fallthru
      _
    %v34 = vld [vmem:[%s2] sm:$0xff]
    %v35 = vld [vmem:[#allocation2] sm:$0xff]
    %v36 = vld [vmem:[#allocation2 + $0x8] sm:$0xff]
    %v37 = vld [vmem:[#allocation2 + $0x10] sm:$0xff]
    %v38 = vld [vmem:[#allocation2 + $0x18] sm:$0xff]
    %v39 = vld [vmem:[#allocation2 + $0x20] sm:$0xff]
    %v40 = vld [vmem:[#allocation2 + $0x28] sm:$0xff]
    %v41 = vld [vmem:[#allocation2 + $0x30] sm:$0xff]
    %v42 = vld [vmem:[#allocation2 + $0x38] sm:$0xff]
    %v43 = vld [vmem:[#allocation2 + $0x40] sm:$0xff]
    %v44 = vld [vmem:[#allocation2 + $0x48] sm:$0xff]
    %v45 = vld [vmem:[#allocation2 + $0x50] sm:$0xff]
    %v46 = vld [vmem:[#allocation2 + $0x58] sm:$0xff]
    %v47 = vld [vmem:[#allocation2 + $0x60] sm:$0xff]
    %v48 = vld [vmem:[#allocation2 + $0x68] sm:$0xff]
    %v49 = vld [vmem:[#allocation2 + $0x70] sm:$0xff]
    %v50 = vld [vmem:[#allocation2 + $0x78] sm:$0xff]
    %v51 = vand.u32 %v50, 4294901760
    %52 = vmatpush.msra.mxu0 %v51
    %v53 = vand.u32 %v49, 4294901760
    %54 = vmatpush.msra.mxu0 %v53
    %v55 = vand.u32 %v48, 4294901760
    %56 = vmatpush.msra.mxu0 %v55
    %v57 = vand.u32 %v47, 4294901760
    %58 = vmatpush.msra.mxu0 %v57
    %v59 = vand.u32 %v46, 4294901760
    %60 = vmatpush.msra.mxu0 %v59
    %v61 = vand.u32 %v45, 4294901760
    %62 = vmatpush.msra.mxu0 %v61
    %v63 = vand.u32 %v44, 4294901760
    %64 = vmatpush.msra.mxu0 %v63
    %v65 = vand.u32 %v43, 4294901760
    %66 = vmatpush.msra.mxu0 %v65
    %v67 = vand.u32 %v42, 4294901760
    %68 = vmatpush.msra.mxu0 %v67
    %v69 = vand.u32 %v41, 4294901760
    %70 = vmatpush.msra.mxu0 %v69
    %v71 = vand.u32 %v40, 4294901760
    %72 = vmatpush.msra.mxu0 %v71
    %v73 = vand.u32 %v39, 4294901760
    %74 = vmatpush.msra.mxu0 %v73
    %v75 = vand.u32 %v38, 4294901760
    %76 = vmatpush.msra.mxu0 %v75
    %v77 = vand.u32 %v37, 4294901760
    %78 = vmatpush.msra.mxu0 %v77
    %v79 = vand.u32 %v36, 4294901760
    %80 = vmatpush.msra.mxu0 %v79
    %v81 = vand.u32 %v35, 4294901760
    %82 = vmatpush.msra.mxu0 %v81
    %v83 = vand.u32 %v34, 4294901760
    %v84 = vsub.f32 %v34, %v83
    %v85 = vand.u32 %v84, 4294901760
    %v86 = vsub.f32 %v84, %v85
    %v87 = vand.u32 %v86, 4294901760
    %88 = vmatmul.f32.gmra.mxu0 %v87
    %v89 = vpop.f32.mrf.mxu0
    %v90 = vadd.f32 0.0, %v89
    %91 = vdwg.mxu0
    %v92 = vand.u32 %v50, 4294901760
    %v93 = vsub.f32 %v50, %v92
    %v94 = vand.u32 %v93, 4294901760
    %v95 = vsub.f32 %v93, %v94
    %v96 = vand.u32 %v95, 4294901760
    %97 = vmatpush.msra.mxu0 %v96
    %v98 = vand.u32 %v49, 4294901760
    %v99 = vsub.f32 %v49, %v98
    %v100 = vand.u32 %v99, 4294901760
    %v101 = vsub.f32 %v99, %v100
    %v102 = vand.u32 %v101, 4294901760
    %103 = vmatpush.msra.mxu0 %v102
    %v104 = vand.u32 %v48, 4294901760
    %v105 = vsub.f32 %v48, %v104
    %v106 = vand.u32 %v105, 4294901760
    %v107 = vsub.f32 %v105, %v106
    %v108 = vand.u32 %v107, 4294901760
    %109 = vmatpush.msra.mxu0 %v108
    %v110 = vand.u32 %v47, 4294901760
    %v111 = vsub.f32 %v47, %v110
    %v112 = vand.u32 %v111, 4294901760
    %v113 = vsub.f32 %v111, %v112
    %v114 = vand.u32 %v113, 4294901760
    %115 = vmatpush.msra.mxu0 %v114
    %v116 = vand.u32 %v46, 4294901760
    %v117 = vsub.f32 %v46, %v116
    %v118 = vand.u32 %v117, 4294901760
    %v119 = vsub.f32 %v117, %v118
    %v120 = vand.u32 %v119, 4294901760
    %121 = vmatpush.msra.mxu0 %v120
    %v122 = vand.u32 %v45, 4294901760
    %v123 = vsub.f32 %v45, %v122
    %v124 = vand.u32 %v123, 4294901760
    %v125 = vsub.f32 %v123, %v124
    %v126 = vand.u32 %v125, 4294901760
    %127 = vmatpush.msra.mxu0 %v126
    %v128 = vand.u32 %v44, 4294901760
    %v129 = vsub.f32 %v44, %v128
    %v130 = vand.u32 %v129, 4294901760
    %v131 = vsub.f32 %v129, %v130
    %v132 = vand.u32 %v131, 4294901760
    %133 = vmatpush.msra.mxu0 %v132
    %v134 = vand.u32 %v43, 4294901760
    %v135 = vsub.f32 %v43, %v134
    %v136 = vand.u32 %v135, 4294901760
    %v137 = vsub.f32 %v135, %v136
    %v138 = vand.u32 %v137, 4294901760
    %139 = vmatpush.msra.mxu0 %v138
    %v140 = vand.u32 %v42, 4294901760
    %v141 = vsub.f32 %v42, %v140
    %v142 = vand.u32 %v141, 4294901760
    %v143 = vsub.f32 %v141, %v142
    %v144 = vand.u32 %v143, 4294901760
    %145 = vmatpush.msra.mxu0 %v144
    %v146 = vand.u32 %v41, 4294901760
    %v147 = vsub.f32 %v41, %v146
    %v148 = vand.u32 %v147, 4294901760
    %v149 = vsub.f32 %v147, %v148
    %v150 = vand.u32 %v149, 4294901760
    %151 = vmatpush.msra.mxu0 %v150
    %v152 = vand.u32 %v40, 4294901760
    %v153 = vsub.f32 %v40, %v152
    %v154 = vand.u32 %v153, 4294901760
    %v155 = vsub.f32 %v153, %v154
    %v156 = vand.u32 %v155, 4294901760
    %157 = vmatpush.msra.mxu0 %v156
    %v158 = vand.u32 %v39, 4294901760
    %v159 = vsub.f32 %v39, %v158
    %v160 = vand.u32 %v159, 4294901760
    %v161 = vsub.f32 %v159, %v160
    %v162 = vand.u32 %v161, 4294901760
    %163 = vmatpush.msra.mxu0 %v162
    %v164 = vand.u32 %v38, 4294901760
    %v165 = vsub.f32 %v38, %v164
    %v166 = vand.u32 %v165, 4294901760
    %v167 = vsub.f32 %v165, %v166
    %v168 = vand.u32 %v167, 4294901760
    %169 = vmatpush.msra.mxu0 %v168
    %v170 = vand.u32 %v37, 4294901760
    %v171 = vsub.f32 %v37, %v170
    %v172 = vand.u32 %v171, 4294901760
    %v173 = vsub.f32 %v171, %v172
    %v174 = vand.u32 %v173, 4294901760
    %175 = vmatpush.msra.mxu0 %v174
    %v176 = vand.u32 %v36, 4294901760
    %v177 = vsub.f32 %v36, %v176
    %v178 = vand.u32 %v177, 4294901760
    %v179 = vsub.f32 %v177, %v178
    %v180 = vand.u32 %v179, 4294901760
    %181 = vmatpush.msra.mxu0 %v180
    %v182 = vand.u32 %v35, 4294901760
    %v183 = vsub.f32 %v35, %v182
    %v184 = vand.u32 %v183, 4294901760
    %v185 = vsub.f32 %v183, %v184
    %v186 = vand.u32 %v185, 4294901760
    %187 = vmatpush.msra.mxu0 %v186
    %v188 = vand.u32 %v34, 4294901760
    %189 = vmatmul.f32.gmra.mxu0 %v188
    %v190 = vpop.f32.mrf.mxu0
    %v191 = vadd.f32 %v90, %v190
    %192 = vdwg.mxu0
    %v193 = vand.u32 %v50, 4294901760
    %v194 = vsub.f32 %v50, %v193
    %195 = vmatpush.msra.mxu0 %v194
    %v196 = vand.u32 %v49, 4294901760
    %v197 = vsub.f32 %v49, %v196
    %198 = vmatpush.msra.mxu0 %v197
    %v199 = vand.u32 %v48, 4294901760
    %v200 = vsub.f32 %v48, %v199
    %201 = vmatpush.msra.mxu0 %v200
    %v202 = vand.u32 %v47, 4294901760
    %v203 = vsub.f32 %v47, %v202
    %204 = vmatpush.msra.mxu0 %v203
    %v205 = vand.u32 %v46, 4294901760
    %v206 = vsub.f32 %v46, %v205
    %207 = vmatpush.msra.mxu0 %v206
    %v208 = vand.u32 %v45, 4294901760
    %v209 = vsub.f32 %v45, %v208
    %210 = vmatpush.msra.mxu0 %v209
    %v211 = vand.u32 %v44, 4294901760
    %v212 = vsub.f32 %v44, %v211
    %213 = vmatpush.msra.mxu0 %v212
    %v214 = vand.u32 %v43, 4294901760
    %v215 = vsub.f32 %v43, %v214
    %216 = vmatpush.msra.mxu0 %v215
    %v217 = vand.u32 %v42, 4294901760
    %v218 = vsub.f32 %v42, %v217
    %219 = vmatpush.msra.mxu0 %v218
    %v220 = vand.u32 %v41, 4294901760
    %v221 = vsub.f32 %v41, %v220
    %222 = vmatpush.msra.mxu0 %v221
    %v223 = vand.u32 %v40, 4294901760
    %v224 = vsub.f32 %v40, %v223
    %225 = vmatpush.msra.mxu0 %v224
    %v226 = vand.u32 %v39, 4294901760
    %v227 = vsub.f32 %v39, %v226
    %228 = vmatpush.msra.mxu0 %v227
    %v229 = vand.u32 %v38, 4294901760
    %v230 = vsub.f32 %v38, %v229
    %231 = vmatpush.msra.mxu0 %v230
    %v232 = vand.u32 %v37, 4294901760
    %v233 = vsub.f32 %v37, %v232
    %234 = vmatpush.msra.mxu0 %v233
    %v235 = vand.u32 %v36, 4294901760
    %v236 = vsub.f32 %v36, %v235
    %237 = vmatpush.msra.mxu0 %v236
    %v238 = vand.u32 %v35, 4294901760
    %v239 = vsub.f32 %v35, %v238
    %240 = vmatpush.msra.mxu0 %v239
    %v241 = vand.u32 %v34, 4294901760
    %v242 = vsub.f32 %v34, %v241
    %243 = vmatmul.f32.gmra.mxu0 %v242
    %v244 = vpop.f32.mrf.mxu0
    %v245 = vadd.f32 %v191, %v244
    %246 = vdwg.mxu0
    %v247 = vand.u32 %v50, 4294901760
    %248 = vmatpush.msra.mxu0 %v247
    %v249 = vand.u32 %v49, 4294901760
    %250 = vmatpush.msra.mxu0 %v249
    %v251 = vand.u32 %v48, 4294901760
    %252 = vmatpush.msra.mxu0 %v251
    %v253 = vand.u32 %v47, 4294901760
    %254 = vmatpush.msra.mxu0 %v253
    %v255 = vand.u32 %v46, 4294901760
    %256 = vmatpush.msra.mxu0 %v255
    %v257 = vand.u32 %v45, 4294901760
    %258 = vmatpush.msra.mxu0 %v257
    %v259 = vand.u32 %v44, 4294901760
    %260 = vmatpush.msra.mxu0 %v259
    %v261 = vand.u32 %v43, 4294901760
    %262 = vmatpush.msra.mxu0 %v261
    %v263 = vand.u32 %v42, 4294901760
    %264 = vmatpush.msra.mxu0 %v263
    %v265 = vand.u32 %v41, 4294901760
    %266 = vmatpush.msra.mxu0 %v265
    %v267 = vand.u32 %v40, 4294901760
    %268 = vmatpush.msra.mxu0 %v267
    %v269 = vand.u32 %v39, 4294901760
    %270 = vmatpush.msra.mxu0 %v269
    %v271 = vand.u32 %v38, 4294901760
    %272 = vmatpush.msra.mxu0 %v271
    %v273 = vand.u32 %v37, 4294901760
    %274 = vmatpush.msra.mxu0 %v273
    %v275 = vand.u32 %v36, 4294901760
    %276 = vmatpush.msra.mxu0 %v275
    %v277 = vand.u32 %v35, 4294901760
    %278 = vmatpush.msra.mxu0 %v277
    %v279 = vand.u32 %v34, 4294901760
    %v280 = vsub.f32 %v34, %v279
    %v281 = vand.u32 %v280, 4294901760
    %282 = vmatmul.f32.gmra.mxu0 %v281
    %v283 = vpop.f32.mrf.mxu0
    %v284 = vadd.f32 %v245, %v283
    %285 = vdwg.mxu0
    %v286 = vand.u32 %v50, 4294901760
    %v287 = vsub.f32 %v50, %v286
    %v288 = vand.u32 %v287, 4294901760
    %289 = vmatpush.msra.mxu0 %v288
    %v290 = vand.u32 %v49, 4294901760
    %v291 = vsub.f32 %v49, %v290
    %v292 = vand.u32 %v291, 4294901760
    %293 = vmatpush.msra.mxu0 %v292
    %v294 = vand.u32 %v48, 4294901760
    %v295 = vsub.f32 %v48, %v294
    %v296 = vand.u32 %v295, 4294901760
    %297 = vmatpush.msra.mxu0 %v296
    %v298 = vand.u32 %v47, 4294901760
    %v299 = vsub.f32 %v47, %v298
    %v300 = vand.u32 %v299, 4294901760
    %301 = vmatpush.msra.mxu0 %v300
    %v302 = vand.u32 %v46, 4294901760
    %v303 = vsub.f32 %v46, %v302
    %v304 = vand.u32 %v303, 4294901760
    %305 = vmatpush.msra.mxu0 %v304
    %v306 = vand.u32 %v45, 4294901760
    %v307 = vsub.f32 %v45, %v306
    %v308 = vand.u32 %v307, 4294901760
    %309 = vmatpush.msra.mxu0 %v308
    %v310 = vand.u32 %v44, 4294901760
    %v311 = vsub.f32 %v44, %v310
    %v312 = vand.u32 %v311, 4294901760
    %313 = vmatpush.msra.mxu0 %v312
    %v314 = vand.u32 %v43, 4294901760
    %v315 = vsub.f32 %v43, %v314
    %v316 = vand.u32 %v315, 4294901760
    %317 = vmatpush.msra.mxu0 %v316
    %v318 = vand.u32 %v42, 4294901760
    %v319 = vsub.f32 %v42, %v318
    %v320 = vand.u32 %v319, 4294901760
    %321 = vmatpush.msra.mxu0 %v320
    %v322 = vand.u32 %v41, 4294901760
    %v323 = vsub.f32 %v41, %v322
    %v324 = vand.u32 %v323, 4294901760
    %325 = vmatpush.msra.mxu0 %v324
    %v326 = vand.u32 %v40, 4294901760
    %v327 = vsub.f32 %v40, %v326
    %v328 = vand.u32 %v327, 4294901760
    %329 = vmatpush.msra.mxu0 %v328
    %v330 = vand.u32 %v39, 4294901760
    %v331 = vsub.f32 %v39, %v330
    %v332 = vand.u32 %v331, 4294901760
    %333 = vmatpush.msra.mxu0 %v332
    %v334 = vand.u32 %v38, 4294901760
    %v335 = vsub.f32 %v38, %v334
    %v336 = vand.u32 %v335, 4294901760
    %337 = vmatpush.msra.mxu0 %v336
    %v338 = vand.u32 %v37, 4294901760
    %v339 = vsub.f32 %v37, %v338
    %v340 = vand.u32 %v339, 4294901760
    %341 = vmatpush.msra.mxu0 %v340
    %v342 = vand.u32 %v36, 4294901760
    %v343 = vsub.f32 %v36, %v342
    %v344 = vand.u32 %v343, 4294901760
    %345 = vmatpush.msra.mxu0 %v344
    %v346 = vand.u32 %v35, 4294901760
    %v347 = vsub.f32 %v35, %v346
    %v348 = vand.u32 %v347, 4294901760
    %349 = vmatpush.msra.mxu0 %v348
    %v350 = vand.u32 %v34, 4294901760
    %351 = vmatmul.f32.gmra.mxu0 %v350
    %v352 = vpop.f32.mrf.mxu0
    %v353 = vadd.f32 %v284, %v352
    %354 = vdwg.mxu0
    %v355 = vand.u32 %v50, 4294901760
    %356 = vmatpush.msra.mxu0 %v355
    %v357 = vand.u32 %v49, 4294901760
    %358 = vmatpush.msra.mxu0 %v357
    %v359 = vand.u32 %v48, 4294901760
    %360 = vmatpush.msra.mxu0 %v359
    %v361 = vand.u32 %v47, 4294901760
    %362 = vmatpush.msra.mxu0 %v361
    %v363 = vand.u32 %v46, 4294901760
    %364 = vmatpush.msra.mxu0 %v363
    %v365 = vand.u32 %v45, 4294901760
    %366 = vmatpush.msra.mxu0 %v365
    %v367 = vand.u32 %v44, 4294901760
    %368 = vmatpush.msra.mxu0 %v367
    %v369 = vand.u32 %v43, 4294901760
    %370 = vmatpush.msra.mxu0 %v369
    %v371 = vand.u32 %v42, 4294901760
    %372 = vmatpush.msra.mxu0 %v371
    %v373 = vand.u32 %v41, 4294901760
    %374 = vmatpush.msra.mxu0 %v373
    %v375 = vand.u32 %v40, 4294901760
    %376 = vmatpush.msra.mxu0 %v375
    %v377 = vand.u32 %v39, 4294901760
    %378 = vmatpush.msra.mxu0 %v377
    %v379 = vand.u32 %v38, 4294901760
    %380 = vmatpush.msra.mxu0 %v379
    %v381 = vand.u32 %v37, 4294901760
    %382 = vmatpush.msra.mxu0 %v381
    %v383 = vand.u32 %v36, 4294901760
    %384 = vmatpush.msra.mxu0 %v383
    %v385 = vand.u32 %v35, 4294901760
    %386 = vmatpush.msra.mxu0 %v385
    %v387 = vand.u32 %v34, 4294901760
    %388 = vmatmul.f32.gmra.mxu0 %v387
    %v389 = vpop.f32.mrf.mxu0
    %v390 = vadd.f32 %v353, %v389
    %391 = vdwg.mxu0
    %v392 = vld [vmem:[%s0] sm:$0xff]
    %394 = vset.pattern.permute.xlu0 0
    %395 = vperm.xlu0 %394, %v392
    %v396 = vpop.permute.xlu0 %395
    %v398 = vmul.f32 %v390, %v396
    %v399 = vld [vmem:[%s1] sm:$0x1]
    %v401 = vperm.slane %v399, 0
    %v403 = vmul.f32 %v398, %v401
    %404 = vst [vmem:[#allocation5] sm:$0xff] %v403
    // Predicated region
    $region22: #{tpu_custom_call.1} parent=1 // pred_check
      _
    $region23: #{tpu_custom_call.1} parent=1 // pred_check_branch
      %406 = sbr.rel (0) target = $region25
    $region24: #{tpu_custom_call.1} parent=1 // pred_region
      %408 = vsyncadd [#allocation4], 0
      %s410 = sshll.u32 [#allocation5], 4
      %s411 = int_to_ptr.vmem [resolvable:$true] %s410
      %s412 = sshll.u32 %s4, 4
      %s413 = int_to_ptr.hbm [resolvable:$true] %s412
      %415 = dma.vmem_to_hbm [thread:$0]  %s411, 128, %s413, [#allocation4]
    $region25: #{tpu_custom_call.1} parent=1 // pred_fallthru
      _
    // Predicated region
    $region26: #{tpu_custom_call.1} parent=1 // pred_check
      _
    $region27: #{tpu_custom_call.1} parent=1 // pred_check_branch
      %417 = sbr.rel (0) target = $region29
    $region28: #{tpu_custom_call.1} parent=1 // pred_region
      %419 = dma.done [#allocation4], 128
    $region29: #{tpu_custom_call.1} parent=1 // pred_fallthru
      _
    %420 = vsyncpa [#allocation3], 1
    %421 = vsyncpa [#allocation4], 1

</llo_original>
